<compile_context>
chip_gen: v7x
topology: tpu7x:2x2x1
jax: 0.10.0
libtpu: 0.0.40
codegen_flags: <defaults>
</compile_context>

<pallas_src>
import functools

import jax
import jax.numpy as jnp
from jax.experimental import pallas as pl
from jax.experimental.pallas import tpu as pltpu


def _round_up(n, m):
    return ((n + m - 1) // m) * m


def _generator_kernel(sigmoid, sigmoid_max, out_dim,
                      x_ref, w1_ref, b1_ref, w2_ref, b2_ref, w3_ref, b3_ref,
                      y_ref, s_ref):
    """Fused forward for both MLP branches on one (TB, D) batch tile.

    Three block-diagonal matmuls compute both branches at once:
      (TB,D) @ (D,F1) -> relu -> @ (F1,F2) -> relu -> @ (F2,D+1)
    Columns [0, D) of the final result are net(x); column D is scaling(x).
    bf16 MXU operands, f32 accumulation / bias / activations.
    """
    x = x_ref[...].astype(jnp.bfloat16)

    h = jnp.dot(x, w1_ref[...], preferred_element_type=jnp.float32) + b1_ref[...]
    h = jnp.maximum(h, 0.0)
    h = jnp.dot(h.astype(jnp.bfloat16), w2_ref[...],
                preferred_element_type=jnp.float32) + b2_ref[...]
    h = jnp.maximum(h, 0.0)
    z = jnp.dot(h.astype(jnp.bfloat16), w3_ref[...],
                preferred_element_type=jnp.float32) + b3_ref[...]

    # net(x): first D lanes of the fused result.
    y_ref[...] = z[:, :out_dim].astype(y_ref.dtype)

    # scaling(x): last lane, with the nonneg / sigmoid*max head.
    s = z[:, out_dim:]
    if sigmoid:
        s = sigmoid_max * jax.nn.sigmoid(s)
    else:
        s = jnp.maximum(s, 0.0)  # nonnegNN output clamp
    s_ref[...] = s.astype(s_ref.dtype)


def _fuse_params(params):
    """Pack the two MLPs into three block-diagonal layers (done once, outside the kernel)."""
    w1, b1 = params["w1"], params["b1"]
    w2, b2 = params["w2"], params["b2"]
    w3, b3 = params["w3"], params["b3"]
    v1, c1 = params["v1"], params["c1"]
    v2, c2 = params["v2"], params["c2"]
    v3, c3 = params["v3"], params["c3"]

    H1, H2 = w1.shape[1], w2.shape[1]
    S1, S2 = v1.shape[1], v2.shape[1]
    Do = w3.shape[1]

    wf1 = jnp.concatenate([w1, v1], axis=1)                     # (D, H1+S1)
    bf1 = jnp.concatenate([b1, c1], axis=1)                     # (1, H1+S1)

    wf2 = jnp.zeros((H1 + S1, H2 + S2), jnp.float32)
    wf2 = wf2.at[:H1, :H2].set(w2).at[H1:, H2:].set(v2)         # blockdiag(w2, v2)
    bf2 = jnp.concatenate([b2, c2], axis=1)                     # (1, H2+S2)

    wf3 = jnp.zeros((H2 + S2, Do + 1), jnp.float32)
    wf3 = wf3.at[:H2, :Do].set(w3).at[H2:, Do:].set(v3)         # blockdiag(w3, v3)
    bf3 = jnp.concatenate([b3, c3], axis=1)                     # (1, D+1)

    # Weights feed the MXU -> bf16; biases added in f32.
    return (wf1.astype(jnp.bfloat16), bf1,
            wf2.astype(jnp.bfloat16), bf2,
            wf3.astype(jnp.bfloat16), bf3)


def generator_forward(x, params, *, sigmoid=False, sigmoid_max=1.0,
                      block_batch=2048):
    """x: (B, input_dim) float32. params: dict of weights (see init_params).

    Returns (net(x): (B, D), scaling(x): (B, 1)).
    """
    B, D = x.shape
    fused = _fuse_params(params)
    wf1, bf1, wf2, bf2, wf3, bf3 = fused
    F1, F2 = wf1.shape[1], wf2.shape[1]

    # Batch tile: multiple of 8 sublanes. Keep >= 2 grid steps when possible so
    # v7x's two TensorCores both get work via dimension_semantics=("parallel",)
    # (an extra ~0.35us step on single-TC v5e/v6e is negligible).
    TB = min(int(block_batch), max(8, _round_up(pl.cdiv(B, 2), 8)))
    TB = max(8, _round_up(TB, 8))
    grid = (pl.cdiv(B, TB),)

    # VMEM budget: every (TB, <=128)-lane f32 tile pads to (TB, 128).
    # Cap at 48 MiB to leave headroom below v7x's 64 MiB physical VMEM.
    lane_pad_bytes = TB * 128 * 4
    weight_bytes = sum(int(a.size) * a.dtype.itemsize for a in fused)
    vmem_needed = (3 * 2 * lane_pad_bytes      # x / y / s, double-buffered
                   + 4 * lane_pad_bytes        # h1 / h2 / z live intermediates
                   + 2 * weight_bytes          # resident fused weights/biases
                   + (2 << 20))                # slack
    vmem_limit = int(min(max(vmem_needed, 8 << 20), 48 << 20))

    # Batch-tiled specs for x / outputs; constant (resident) specs for weights.
    x_spec = pl.BlockSpec((TB, D), lambda i: (i, 0))
    weight_specs = [pl.BlockSpec(a.shape, lambda i: (0, 0)) for a in fused]
    y_spec = pl.BlockSpec((TB, D), lambda i: (i, 0))
    s_spec = pl.BlockSpec((TB, 1), lambda i: (i, 0))

    flops = 2 * B * (D * F1 + F1 * F2 + F2 * (D + 1))
    bytes_accessed = B * (2 * D + 1) * 4 + weight_bytes
    cost = pl.CostEstimate(flops=flops,
                           transcendentals=(B if sigmoid else 0),
                           bytes_accessed=bytes_accessed)

    kernel = functools.partial(_generator_kernel, bool(sigmoid),
                               float(sigmoid_max), int(D))

    y, s = pl.pallas_call(
        kernel,
        out_shape=(jax.ShapeDtypeStruct((B, D), jnp.float32),
                   jax.ShapeDtypeStruct((B, 1), jnp.float32)),
        grid=grid,
        in_specs=[x_spec] + weight_specs,
        out_specs=(y_spec, s_spec),
        compiler_params=pltpu.CompilerParams(
            dimension_semantics=("parallel",),   # v7x: shard batch tiles across both TCs
            vmem_limit_bytes=vmem_limit),
        cost_estimate=cost,
    )(x, *fused)

    return y, s


def init_params(key, input_dim=10, hidden_units=(64, 64), hidden_units_scaling=(32, 32)):
    """Deterministic Glorot-uniform-ish init; biases zero. Weights are (in, out)."""
    def glorot(k, fan_in, fan_out):
        lim = jnp.sqrt(6.0 / (fan_in + fan_out))
        return jax.random.uniform(k, (fan_in, fan_out), jnp.float32, -lim, lim)

    H1, H2 = hidden_units
    S1, S2 = hidden_units_scaling
    ks = jax.random.split(key, 6)
    params = {
        # net: D -> H1 -> H2 -> D
        "w1": glorot(ks[0], input_dim, H1), "b1": jnp.zeros((1, H1), jnp.float32),
        "w2": glorot(ks[1], H1, H2),        "b2": jnp.zeros((1, H2), jnp.float32),
        "w3": glorot(ks[2], H2, input_dim), "b3": jnp.zeros((1, input_dim), jnp.float32),
        # scaling: D -> S1 -> S2 -> 1
        "v1": glorot(ks[3], input_dim, S1), "c1": jnp.zeros((1, S1), jnp.float32),
        "v2": glorot(ks[4], S1, S2),        "c2": jnp.zeros((1, S2), jnp.float32),
        "v3": glorot(ks[5], S2, 1),         "c3": jnp.zeros((1, 1), jnp.float32),
    }
    return params


def _reference_forward(x, p, sigmoid=False, sigmoid_max=1.0):
    h = jnp.maximum(x @ p["w1"] + p["b1"], 0.0)
    h = jnp.maximum(h @ p["w2"] + p["b2"], 0.0)
    y = h @ p["w3"] + p["b3"]
    g = jnp.maximum(x @ p["v1"] + p["c1"], 0.0)
    g = jnp.maximum(g @ p["v2"] + p["c2"], 0.0)
    s = g @ p["v3"] + p["c3"]
    s = sigmoid_max * jax.nn.sigmoid(s) if sigmoid else jnp.maximum(s, 0.0)
    return y, s


if __name__ == "__main__":
    key = jax.random.PRNGKey(0)
    k_param, k_x1, k_x2 = jax.random.split(key, 3)

    input_dim = 10
    params = init_params(k_param, input_dim=input_dim,
                         hidden_units=(64, 64), hidden_units_scaling=(32, 32))

    # bf16 matmul operands (f32 accumulation) -> compare against the f32
    # reference at a tolerance that covers bf16 rounding of x and the weights.
    TOL = dict(atol=5e-2, rtol=5e-2)

    # Case 1: small batch (split into >=2 grid steps for v7x dual-TC sharding).
    x1 = jax.random.normal(k_x1, (16, input_dim), jnp.float32)
    y1, s1 = generator_forward(x1, params)
    jax.block_until_ready((y1, s1))
    y1_ref, s1_ref = _reference_forward(x1, params)
    assert y1.shape == (16, input_dim) and s1.shape == (16, 1)
    assert jnp.allclose(y1, y1_ref, **TOL)
    assert jnp.allclose(s1, s1_ref, **TOL)

    # Case 2: multi-step grid with ragged tail (exercises pipelining + writeback masking).
    x2 = jax.random.normal(k_x2, (40, input_dim), jnp.float32)
    y2, s2 = generator_forward(x2, params, block_batch=16)
    jax.block_until_ready((y2, s2))
    y2_ref, s2_ref = _reference_forward(x2, params)
    assert jnp.allclose(y2, y2_ref, **TOL)
    assert jnp.allclose(s2, s2_ref, **TOL)

    # Case 3: sigmoid scaling head.
    y3, s3 = generator_forward(x1, params, sigmoid=True, sigmoid_max=5.0)
    jax.block_until_ready((y3, s3))
    y3_ref, s3_ref = _reference_forward(x1, params, sigmoid=True, sigmoid_max=5.0)
    assert jnp.allclose(y3, y3_ref, **TOL)
    assert jnp.allclose(s3, s3_ref, **TOL)

    print("KERNEL_OK")
</pallas_src>

<mosaic_0001>
module attributes {stable_mosaic.version = 11 : i64} {
  func.func @_generator_kernel(%arg0: i32, %arg1: memref<8x10xf32, #tpu.memory_space<vmem>>, %arg2: memref<10x96xbf16, #tpu.memory_space<vmem>>, %arg3: memref<1x96xf32, #tpu.memory_space<vmem>>, %arg4: memref<96x96xbf16, #tpu.memory_space<vmem>>, %arg5: memref<1x96xf32, #tpu.memory_space<vmem>>, %arg6: memref<96x11xbf16, #tpu.memory_space<vmem>>, %arg7: memref<1x11xf32, #tpu.memory_space<vmem>>, %arg8: memref<8x10xf32, #tpu.memory_space<vmem>>, %arg9: memref<8x1xf32, #tpu.memory_space<vmem>>) attributes {dimension_semantics = [#tpu.dimension_semantics<parallel>], iteration_bounds = array<i64: 2>, scalar_prefetch = 0 : i64, scratch_operands = 0 : i64, tpu.core_type = #tpu.core_type<tc>, window_params = [{transform_indices = @transform_0, window_bounds = array<i64: 8, 10>}, {pipeline_mode = #tpu.pipeline_mode<synchronous>, transform_indices = @transform_1, window_bounds = array<i64: 10, 96>}, {pipeline_mode = #tpu.pipeline_mode<synchronous>, transform_indices = @transform_2, window_bounds = array<i64: 1, 96>}, {pipeline_mode = #tpu.pipeline_mode<synchronous>, transform_indices = @transform_3, window_bounds = array<i64: 96, 96>}, {pipeline_mode = #tpu.pipeline_mode<synchronous>, transform_indices = @transform_4, window_bounds = array<i64: 1, 96>}, {pipeline_mode = #tpu.pipeline_mode<synchronous>, transform_indices = @transform_5, window_bounds = array<i64: 96, 11>}, {pipeline_mode = #tpu.pipeline_mode<synchronous>, transform_indices = @transform_6, window_bounds = array<i64: 1, 11>}, {transform_indices = @transform_7, window_bounds = array<i64: 8, 10>}, {transform_indices = @transform_8, window_bounds = array<i64: 8, 1>}]} {
    %c0 = arith.constant 0 : index
    %c0_0 = arith.constant 0 : index
    %0 = vector.load %arg1[%c0, %c0_0] : memref<8x10xf32, #tpu.memory_space<vmem>>, vector<8x10xf32>
    %1 = arith.truncf %0 : vector<8x10xf32> to vector<8x10xbf16>
    %c0_1 = arith.constant 0 : index
    %c0_2 = arith.constant 0 : index
    %2 = vector.load %arg2[%c0_1, %c0_2] : memref<10x96xbf16, #tpu.memory_space<vmem>>, vector<10x96xbf16>
    %cst = arith.constant dense<0.000000e+00> : vector<8x96xf32>
    %3 = tpu.matmul %1, %2, %cst {dimension_numbers = #tpu.dot_dimension_numbers<[1], [0], [0], [1], [0, 0, 1, 1], [], []>} : vector<8x10xbf16>, vector<10x96xbf16>, vector<8x96xf32> -> vector<8x96xf32>
    %c0_3 = arith.constant 0 : index
    %c0_4 = arith.constant 0 : index
    %4 = vector.load %arg3[%c0_3, %c0_4] : memref<1x96xf32, #tpu.memory_space<vmem>>, vector<1x96xf32>
    %5 = vector.broadcast %4 : vector<1x96xf32> to vector<8x96xf32>
    %6 = arith.addf %3, %5 : vector<8x96xf32>
    %cst_5 = arith.constant 0.000000e+00 : f32
    %7 = vector.broadcast %cst_5 : f32 to vector<8x96xf32>
    %8 = arith.maximumf %6, %7 : vector<8x96xf32>
    %9 = arith.truncf %8 : vector<8x96xf32> to vector<8x96xbf16>
    %c0_6 = arith.constant 0 : index
    %c0_7 = arith.constant 0 : index
    %10 = vector.load %arg4[%c0_6, %c0_7] : memref<96x96xbf16, #tpu.memory_space<vmem>>, vector<96x96xbf16>
    %cst_8 = arith.constant dense<0.000000e+00> : vector<8x96xf32>
    %11 = tpu.matmul %9, %10, %cst_8 {dimension_numbers = #tpu.dot_dimension_numbers<[1], [0], [0], [1], [0, 0, 1, 1], [], []>} : vector<8x96xbf16>, vector<96x96xbf16>, vector<8x96xf32> -> vector<8x96xf32>
    %c0_9 = arith.constant 0 : index
    %c0_10 = arith.constant 0 : index
    %12 = vector.load %arg5[%c0_9, %c0_10] : memref<1x96xf32, #tpu.memory_space<vmem>>, vector<1x96xf32>
    %13 = vector.broadcast %12 : vector<1x96xf32> to vector<8x96xf32>
    %14 = arith.addf %11, %13 : vector<8x96xf32>
    %cst_11 = arith.constant 0.000000e+00 : f32
    %15 = vector.broadcast %cst_11 : f32 to vector<8x96xf32>
    %16 = arith.maximumf %14, %15 : vector<8x96xf32>
    %17 = arith.truncf %16 : vector<8x96xf32> to vector<8x96xbf16>
    %c0_12 = arith.constant 0 : index
    %c0_13 = arith.constant 0 : index
    %18 = vector.load %arg6[%c0_12, %c0_13] : memref<96x11xbf16, #tpu.memory_space<vmem>>, vector<96x11xbf16>
    %cst_14 = arith.constant dense<0.000000e+00> : vector<8x11xf32>
    %19 = tpu.matmul %17, %18, %cst_14 {dimension_numbers = #tpu.dot_dimension_numbers<[1], [0], [0], [1], [0, 0, 1, 1], [], []>} : vector<8x96xbf16>, vector<96x11xbf16>, vector<8x11xf32> -> vector<8x11xf32>
    %c0_15 = arith.constant 0 : index
    %c0_16 = arith.constant 0 : index
    %20 = vector.load %arg7[%c0_15, %c0_16] : memref<1x11xf32, #tpu.memory_space<vmem>>, vector<1x11xf32>
    %21 = vector.broadcast %20 : vector<1x11xf32> to vector<8x11xf32>
    %22 = arith.addf %19, %21 : vector<8x11xf32>
    %23 = vector.extract_strided_slice %22 {offsets = [0, 0], sizes = [8, 10], strides = [1, 1]} : vector<8x11xf32> to vector<8x10xf32>
    %c0_17 = arith.constant 0 : index
    %c0_18 = arith.constant 0 : index
    %24 = vector.load %arg8[%c0_17, %c0_18] : memref<8x10xf32, #tpu.memory_space<vmem>>, vector<8x10xf32>
    tpu.vector_store %arg8[%c0_17, %c0_18], %23 {strides = array<i32>} : memref<8x10xf32, #tpu.memory_space<vmem>>, vector<8x10xf32>,
    %25 = vector.extract_strided_slice %22 {offsets = [0, 10], sizes = [8, 1], strides = [1, 1]} : vector<8x11xf32> to vector<8x1xf32>
    %cst_19 = arith.constant 0.000000e+00 : f32
    %26 = vector.broadcast %cst_19 : f32 to vector<8x1xf32>
    %27 = arith.maximumf %25, %26 : vector<8x1xf32>
    %c0_20 = arith.constant 0 : index
    %c0_21 = arith.constant 0 : index
    %28 = vector.load %arg9[%c0_20, %c0_21] : memref<8x1xf32, #tpu.memory_space<vmem>>, vector<8x1xf32>
    tpu.vector_store %arg9[%c0_20, %c0_21], %27 {strides = array<i32>} : memref<8x1xf32, #tpu.memory_space<vmem>>, vector<8x1xf32>,
    return
  }
  func.func @transform_0(%arg0: i32) -> (i32, i32) {
    %c0_i32 = arith.constant 0 : i32
    %c0_i32_0 = arith.constant 0 : i32
    return %arg0, %c0_i32 : i32, i32
  }
  func.func @transform_1(%arg0: i32) -> (i32, i32) {
    %c0_i32 = arith.constant 0 : i32
    %c0_i32_0 = arith.constant 0 : i32
    %c0_i32_1 = arith.constant 0 : i32
    return %c0_i32, %c0_i32_0 : i32, i32
  }
  func.func @transform_2(%arg0: i32) -> (i32, i32) {
    %c0_i32 = arith.constant 0 : i32
    %c0_i32_0 = arith.constant 0 : i32
    %c0_i32_1 = arith.constant 0 : i32
    return %c0_i32, %c0_i32_0 : i32, i32
  }
  func.func @transform_3(%arg0: i32) -> (i32, i32) {
    %c0_i32 = arith.constant 0 : i32
    %c0_i32_0 = arith.constant 0 : i32
    %c0_i32_1 = arith.constant 0 : i32
    return %c0_i32, %c0_i32_0 : i32, i32
  }
  func.func @transform_4(%arg0: i32) -> (i32, i32) {
    %c0_i32 = arith.constant 0 : i32
    %c0_i32_0 = arith.constant 0 : i32
    %c0_i32_1 = arith.constant 0 : i32
    return %c0_i32, %c0_i32_0 : i32, i32
  }
  func.func @transform_5(%arg0: i32) -> (i32, i32) {
    %c0_i32 = arith.constant 0 : i32
    %c0_i32_0 = arith.constant 0 : i32
    %c0_i32_1 = arith.constant 0 : i32
    return %c0_i32, %c0_i32_0 : i32, i32
  }
  func.func @transform_6(%arg0: i32) -> (i32, i32) {
    %c0_i32 = arith.constant 0 : i32
    %c0_i32_0 = arith.constant 0 : i32
    %c0_i32_1 = arith.constant 0 : i32
    return %c0_i32, %c0_i32_0 : i32, i32
  }
  func.func @transform_7(%arg0: i32) -> (i32, i32) {
    %c0_i32 = arith.constant 0 : i32
    %c0_i32_0 = arith.constant 0 : i32
    return %arg0, %c0_i32 : i32, i32
  }
  func.func @transform_8(%arg0: i32) -> (i32, i32) {
    %c0_i32 = arith.constant 0 : i32
    %c0_i32_0 = arith.constant 0 : i32
    return %arg0, %c0_i32 : i32, i32
  }
}

</mosaic_0001>

<llo_original>
// kernel: tpu_custom_call.1
$region0: #{tpu_custom_call.1}
  #allocation0 [shape = 'u32[]', space=smem, size = 0x4, offset = 0x4, fixed_abs, tag = 'smem constant byte address 0x4 - core index']
  #allocation1 [shape = 'u32[144,128]{1,0:T(1,128)}', space=vmem, size = 0x12000, scoped, tag = 'internal scratch']
  %s0 = inlined_call_operand.vmem [shape: f32[16,10], index: 0, kind: input, shape index: {}]
  %s1 = inlined_call_operand.hbm [shape: bf16[10,96], index: 1, kind: input, shape index: {}]
  %s2 = inlined_call_operand.vmem [shape: f32[1,96], index: 2, kind: input, shape index: {}]
  %s3 = inlined_call_operand.vmem [shape: bf16[96,96], index: 3, kind: input, shape index: {}]
  %s4 = inlined_call_operand.vmem [shape: f32[1,96], index: 4, kind: input, shape index: {}]
  %s5 = inlined_call_operand.vmem [shape: bf16[96,11], index: 5, kind: input, shape index: {}]
  %s6 = inlined_call_operand.vmem [shape: f32[1,11], index: 6, kind: input, shape index: {}]
  %s7 = inlined_call_operand.hbm [shape: f32[16,10], index: 7, kind: output, shape index: {0}]
  %s8 = inlined_call_operand.vmem [shape: f32[16,1], index: 8, kind: output, shape index: {1}]
  %9 = xla_tuple %s7, %s8
  %s10 = sld [smem:[#allocation0]]
  $region73: #{tpu_custom_call.1} parent=0
    _
  %s12 = ssub.s32 1, %s10
  %s13 = scalar_select 0, %s12, %s10
  $region1: #{tpu_custom_call.1} parent=0
    #allocation2 [shape = 'u8[4096]{0}', space=vmem, size = 0x1000, scoped, tag = 'input window, operand 1, single buffered']
    #allocation3 [shape = 's32[2]{0}', space=sflag, size = 0x8, scoped, tag = 'scoped memory for tpu_custom_call.1']
    #allocation4 [shape = 's32[2]{0}', space=sflag, size = 0x8, scoped, tag = 'scoped memory for tpu_custom_call.1']
    #allocation5 [shape = 'u8[8192]{0}', space=vmem, size = 0x2000, scoped, tag = 'output window, operand 0']
    %14 = vsyncpa [#allocation3], 0
    %15 = vsyncpa [#allocation4], 0
    %s16 = scalar_lea.sflag [#allocation4], 1
    %17 = vsyncpa %s16, 0
    loop: start=0, step=1, limit=4
    $region2: #{tpu_custom_call.1} parent=1 // loop_pre_header
      _
    $region3: #{tpu_custom_call.1} parent=1 // loop_header
      %s19 = sphi 0, %s23
      %p20 = scmp.ge.s32.totalorder %s19, 4
      %s29 = sphi 0, %s31
      %s32 = sphi 0, %s29
      %s33 = sphi 0, %s32
      %s49 = sphi 0, %s33
      %s53 = sphi 0, %s53
      %s55 = sphi 0, %s53
      %s56 = sphi 0, %s55
      %s70 = sphi 0, %s56
      %s74 = sphi 0, %s74
      %s76 = sphi 0, %s74
      %s77 = sphi 0, %s76
      %s91 = sphi 0, %s77
      %s95 = sphi 0, %s95
      %s97 = sphi 0, %s95
      %s98 = sphi 0, %s97
      %s112 = sphi 0, %s98
      %s116 = sphi 0, %s116
      %s118 = sphi 0, %s116
      %s119 = sphi 0, %s118
      %s133 = sphi 0, %s119
      %s137 = sphi 0, %s137
      %s139 = sphi 0, %s137
      %s140 = sphi 0, %s139
      %s154 = sphi 0, %s140
      %s158 = sphi 0, %s158
      %s160 = sphi 0, %s158
      %s161 = sphi 0, %s160
      %s175 = sphi 0, %s161
      %s181 = sphi 0, %s183
      %s184 = sphi 0, %s181
      %s185 = sphi 0, %s184
      %s201 = sphi 0, %s185
      %s207 = sphi 0, %s209
      %s210 = sphi 0, %s207
      %s211 = sphi 0, %s210
      %s227 = sphi 0, %s211
    $region4: #{tpu_custom_call.1} parent=1 // loop_header_branch
      %22 = sbr.rel (%p20) target = $region8
    $region5: #{tpu_custom_call.1} parent=1 // loop_body
      %s24 = ssub.s32 %s19, 1
      %s25 = ssub.s32 %s19, 2
      %s26 = sadd.s32 %s19, 1
      %s27 = ssub.s32 %s19, %s26
      %p28 = scmp.eq.s32.totalorder %s27, 0
      %s30 = sadd.s32 %s29, 1
      %s31 = scalar_select %p28, %s29, %s30
      %p34 = pneg %p28
      %p35 = scmp.eq.s32.totalorder %s19, 1
      %p36 = por %p34, %p35
      %p37 = scmp.ne.s32.totalorder %s29, %s32
      %p38 = scmp.eq.s32.totalorder %s19, 0
      %p39 = por %p37, %p38
      %p40 = scmp.ne.s32.totalorder %s29, %s32
      %p41 = scmp.eq.s32.totalorder %s24, 1
      %p42 = por %p40, %p41
      %p43 = scmp.ne.s32.totalorder %s32, %s33
      %p44 = scmp.eq.s32.totalorder %s24, 0
      %p45 = por %p43, %p44
      %p46 = scmp.ne.s32.totalorder %s32, %s33
      %p47 = scmp.eq.s32.totalorder %s25, 1
      %p48 = por %p46, %p47
      %p50 = scmp.ne.s32.totalorder %s33, %s49
      %p51 = scmp.eq.s32.totalorder %s25, 0
      %p52 = por %p50, %p51
      %s54 = sadd.s32 %s53, 1
      %p57 = scmp.eq.s32.totalorder %s19, 1
      %p58 = scmp.ne.s32.totalorder %s53, %s55
      %p59 = scmp.eq.s32.totalorder %s19, 0
      %p60 = por %p58, %p59
      %p61 = scmp.ne.s32.totalorder %s53, %s55
      %p62 = scmp.eq.s32.totalorder %s24, 1
      %p63 = por %p61, %p62
      %p64 = scmp.ne.s32.totalorder %s55, %s56
      %p65 = scmp.eq.s32.totalorder %s24, 0
      %p66 = por %p64, %p65
      %p67 = scmp.ne.s32.totalorder %s55, %s56
      %p68 = scmp.eq.s32.totalorder %s25, 1
      %p69 = por %p67, %p68
      %p71 = scmp.ne.s32.totalorder %s56, %s70
      %p72 = scmp.eq.s32.totalorder %s25, 0
      %p73 = por %p71, %p72
      %s75 = sadd.s32 %s74, 1
      %p78 = scmp.eq.s32.totalorder %s19, 1
      %p79 = scmp.ne.s32.totalorder %s74, %s76
      %p80 = scmp.eq.s32.totalorder %s19, 0
      %p81 = por %p79, %p80
      %p82 = scmp.ne.s32.totalorder %s74, %s76
      %p83 = scmp.eq.s32.totalorder %s24, 1
      %p84 = por %p82, %p83
      %p85 = scmp.ne.s32.totalorder %s76, %s77
      %p86 = scmp.eq.s32.totalorder %s24, 0
      %p87 = por %p85, %p86
      %p88 = scmp.ne.s32.totalorder %s76, %s77
      %p89 = scmp.eq.s32.totalorder %s25, 1
      %p90 = por %p88, %p89
      %p92 = scmp.ne.s32.totalorder %s77, %s91
      %p93 = scmp.eq.s32.totalorder %s25, 0
      %p94 = por %p92, %p93
      %s96 = sadd.s32 %s95, 1
      %p99 = scmp.eq.s32.totalorder %s19, 1
      %p100 = scmp.ne.s32.totalorder %s95, %s97
      %p101 = scmp.eq.s32.totalorder %s19, 0
      %p102 = por %p100, %p101
      %p103 = scmp.ne.s32.totalorder %s95, %s97
      %p104 = scmp.eq.s32.totalorder %s24, 1
      %p105 = por %p103, %p104
      %p106 = scmp.ne.s32.totalorder %s97, %s98
      %p107 = scmp.eq.s32.totalorder %s24, 0
      %p108 = por %p106, %p107
      %p109 = scmp.ne.s32.totalorder %s97, %s98
      %p110 = scmp.eq.s32.totalorder %s25, 1
      %p111 = por %p109, %p110
      %p113 = scmp.ne.s32.totalorder %s98, %s112
      %p114 = scmp.eq.s32.totalorder %s25, 0
      %p115 = por %p113, %p114
      %s117 = sadd.s32 %s116, 1
      %p120 = scmp.eq.s32.totalorder %s19, 1
      %p121 = scmp.ne.s32.totalorder %s116, %s118
      %p122 = scmp.eq.s32.totalorder %s19, 0
      %p123 = por %p121, %p122
      %p124 = scmp.ne.s32.totalorder %s116, %s118
      %p125 = scmp.eq.s32.totalorder %s24, 1
      %p126 = por %p124, %p125
      %p127 = scmp.ne.s32.totalorder %s118, %s119
      %p128 = scmp.eq.s32.totalorder %s24, 0
      %p129 = por %p127, %p128
      %p130 = scmp.ne.s32.totalorder %s118, %s119
      %p131 = scmp.eq.s32.totalorder %s25, 1
      %p132 = por %p130, %p131
      %p134 = scmp.ne.s32.totalorder %s119, %s133
      %p135 = scmp.eq.s32.totalorder %s25, 0
      %p136 = por %p134, %p135
      %s138 = sadd.s32 %s137, 1
      %p141 = scmp.eq.s32.totalorder %s19, 1
      %p142 = scmp.ne.s32.totalorder %s137, %s139
      %p143 = scmp.eq.s32.totalorder %s19, 0
      %p144 = por %p142, %p143
      %p145 = scmp.ne.s32.totalorder %s137, %s139
      %p146 = scmp.eq.s32.totalorder %s24, 1
      %p147 = por %p145, %p146
      %p148 = scmp.ne.s32.totalorder %s139, %s140
      %p149 = scmp.eq.s32.totalorder %s24, 0
      %p150 = por %p148, %p149
      %p151 = scmp.ne.s32.totalorder %s139, %s140
      %p152 = scmp.eq.s32.totalorder %s25, 1
      %p153 = por %p151, %p152
      %p155 = scmp.ne.s32.totalorder %s140, %s154
      %p156 = scmp.eq.s32.totalorder %s25, 0
      %p157 = por %p155, %p156
      %s159 = sadd.s32 %s158, 1
      %p162 = scmp.eq.s32.totalorder %s19, 1
      %p163 = scmp.ne.s32.totalorder %s158, %s160
      %p164 = scmp.eq.s32.totalorder %s19, 0
      %p165 = por %p163, %p164
      %p166 = scmp.ne.s32.totalorder %s158, %s160
      %p167 = scmp.eq.s32.totalorder %s24, 1
      %p168 = por %p166, %p167
      %p169 = scmp.ne.s32.totalorder %s160, %s161
      %p170 = scmp.eq.s32.totalorder %s24, 0
      %p171 = por %p169, %p170
      %p172 = scmp.ne.s32.totalorder %s160, %s161
      %p173 = scmp.eq.s32.totalorder %s25, 1
      %p174 = por %p172, %p173
      %p176 = scmp.ne.s32.totalorder %s161, %s175
      %p177 = scmp.eq.s32.totalorder %s25, 0
      %p178 = por %p176, %p177
      %s179 = ssub.s32 %s19, %s26
      %p180 = scmp.eq.s32.totalorder %s179, 0
      %s182 = sadd.s32 %s181, 1
      %s183 = scalar_select %p180, %s181, %s182
      %p186 = pneg %p180
      %p187 = scmp.eq.s32.totalorder %s19, 1
      %p188 = por %p186, %p187
      %p189 = scmp.ne.s32.totalorder %s181, %s184
      %p190 = scmp.eq.s32.totalorder %s19, 0
      %p191 = por %p189, %p190
      %p192 = scmp.ne.s32.totalorder %s181, %s184
      %p193 = scmp.eq.s32.totalorder %s24, 1
      %p194 = por %p192, %p193
      %p195 = scmp.ne.s32.totalorder %s184, %s185
      %p196 = scmp.eq.s32.totalorder %s24, 0
      %p197 = por %p195, %p196
      %p198 = scmp.ne.s32.totalorder %s184, %s185
      %p199 = scmp.eq.s32.totalorder %s25, 1
      %p200 = por %p198, %p199
      %p202 = scmp.ne.s32.totalorder %s185, %s201
      %p203 = scmp.eq.s32.totalorder %s25, 0
      %p204 = por %p202, %p203
      %s205 = ssub.s32 %s19, %s26
      %p206 = scmp.eq.s32.totalorder %s205, 0
      %s208 = sadd.s32 %s207, 1
      %s209 = scalar_select %p206, %s207, %s208
      %p212 = pneg %p206
      %p213 = scmp.eq.s32.totalorder %s19, 1
      %p214 = por %p212, %p213
      %p215 = scmp.ne.s32.totalorder %s207, %s210
      %p216 = scmp.eq.s32.totalorder %s19, 0
      %p217 = por %p215, %p216
      %p218 = scmp.ne.s32.totalorder %s207, %s210
      %p219 = scmp.eq.s32.totalorder %s24, 1
      %p220 = por %p218, %p219
      %p221 = scmp.ne.s32.totalorder %s210, %s211
      %p222 = scmp.eq.s32.totalorder %s24, 0
      %p223 = por %p221, %p222
      %p224 = scmp.ne.s32.totalorder %s210, %s211
      %p225 = scmp.eq.s32.totalorder %s25, 1
      %p226 = por %p224, %p225
      %p228 = scmp.ne.s32.totalorder %s211, %s227
      %p229 = scmp.eq.s32.totalorder %s25, 0
      %p230 = por %p228, %p229
      %p231 = scmp.le.s32.totalorder 1, %s19
      %p232 = scmp.lt.s32.totalorder %s19, 3
      %p233 = pnand %p231, %p232
      %p234 = pneg %p233
      // Predicated region
      $region9: #{tpu_custom_call.1} parent=5 // pred_check
        _
      $region10: #{tpu_custom_call.1} parent=5 // pred_check_branch
        %236 = sbr.rel (%p233) target = $region12
      $region11: #{tpu_custom_call.1} parent=5 // pred_region
        %s237 = ssub.s32 %s19, 1
        // Predicated region
        $region13: #{tpu_custom_call.1} parent=11 // pred_check
          %p238 = pneg %p66
        $region14: #{tpu_custom_call.1} parent=11 // pred_check_branch
          %240 = sbr.rel (%p238) target = $region16
        $region15: #{tpu_custom_call.1} parent=11 // pred_region
          %s242 = ssub.s32 128, 128
          %243 = vsyncadd [#allocation3], %s242
          %s244 = sshll.u32 [#allocation2], 4
          %s245 = int_to_ptr.vmem [resolvable:$true] %s244
          %250 = dma.hbm_to_vmem [thread:$0]  %s1, 128, %s245, [#allocation3], 64, 64, 4
        $region16: #{tpu_custom_call.1} parent=11 // pred_fallthru
          _
        // Predicated region
        $region17: #{tpu_custom_call.1} parent=11 // pred_check
          %p251 = pneg %p87
        $region18: #{tpu_custom_call.1} parent=11 // pred_check_branch
          %253 = sbr.rel (%p251) target = $region20
        $region19: #{tpu_custom_call.1} parent=11 // pred_region
          _
        $region20: #{tpu_custom_call.1} parent=11 // pred_fallthru
          _
        // Predicated region
        $region21: #{tpu_custom_call.1} parent=11 // pred_check
          %p254 = pneg %p108
        $region22: #{tpu_custom_call.1} parent=11 // pred_check_branch
          %256 = sbr.rel (%p254) target = $region24
        $region23: #{tpu_custom_call.1} parent=11 // pred_region
          _
        $region24: #{tpu_custom_call.1} parent=11 // pred_fallthru
          _
        // Predicated region
        $region25: #{tpu_custom_call.1} parent=11 // pred_check
          %p257 = pneg %p129
        $region26: #{tpu_custom_call.1} parent=11 // pred_check_branch
          %259 = sbr.rel (%p257) target = $region28
        $region27: #{tpu_custom_call.1} parent=11 // pred_region
          _
        $region28: #{tpu_custom_call.1} parent=11 // pred_fallthru
          _
        // Predicated region
        $region29: #{tpu_custom_call.1} parent=11 // pred_check
          %p260 = pneg %p150
        $region30: #{tpu_custom_call.1} parent=11 // pred_check_branch
          %262 = sbr.rel (%p260) target = $region32
        $region31: #{tpu_custom_call.1} parent=11 // pred_region
          _
        $region32: #{tpu_custom_call.1} parent=11 // pred_fallthru
          _
        // Predicated region
        $region33: #{tpu_custom_call.1} parent=11 // pred_check
          %p263 = pneg %p171
        $region34: #{tpu_custom_call.1} parent=11 // pred_check_branch
          %265 = sbr.rel (%p263) target = $region36
        $region35: #{tpu_custom_call.1} parent=11 // pred_region
          _
        $region36: #{tpu_custom_call.1} parent=11 // pred_fallthru
          _
      $region12: #{tpu_custom_call.1} parent=5 // pred_fallthru
        _
      %p266 = scmp.lt.s32.totalorder %s19, 2
      // Predicated region
      $region37: #{tpu_custom_call.1} parent=5 // pred_check
        %p267 = pneg %p266
      $region38: #{tpu_custom_call.1} parent=5 // pred_check_branch
        %269 = sbr.rel (%p267) target = $region40
      $region39: #{tpu_custom_call.1} parent=5 // pred_region
        // Predicated region
        $region41: #{tpu_custom_call.1} parent=39 // pred_check
          %p270 = pneg %p39
        $region42: #{tpu_custom_call.1} parent=39 // pred_check_branch
          %272 = sbr.rel (%p270) target = $region44
        $region43: #{tpu_custom_call.1} parent=39 // pred_region
          %p273 = scmp.lt.s32.totalorder %s19, 1
          %s274 = scalar_select %p273, %s19, 1
          %s275 = smul.addr %s274, 8
          %s276 = scalar_lea.vmem %s0, %s275
        $region44: #{tpu_custom_call.1} parent=39 // pred_fallthru
          _
      $region40: #{tpu_custom_call.1} parent=5 // pred_fallthru
        _
      %p277 = scmp.le.s32.totalorder 1, %s19
      %p278 = scmp.lt.s32.totalorder %s19, 3
      %p279 = pnand %p277, %p278
      %p280 = pneg %p279
      // Predicated region
      $region45: #{tpu_custom_call.1} parent=5 // pred_check
        _
      $region46: #{tpu_custom_call.1} parent=5 // pred_check_branch
        %282 = sbr.rel (%p279) target = $region48
      $region47: #{tpu_custom_call.1} parent=5 // pred_region
        %s283 = ssub.s32 %s19, 1
        // Predicated region
        $region49: #{tpu_custom_call.1} parent=47 // pred_check
          %p284 = pneg %p66
        $region50: #{tpu_custom_call.1} parent=47 // pred_check_branch
          %286 = sbr.rel (%p284) target = $region52
        $region51: #{tpu_custom_call.1} parent=47 // pred_region
          %287 = dma.done [#allocation3], 128
        $region52: #{tpu_custom_call.1} parent=47 // pred_fallthru
          _
        %p288 = scmp.lt.s32.totalorder %s24, 1
        %s289 = scalar_select %p288, %s24, 1
        %s290 = smul.addr %s289, 8
        %s291 = scalar_lea.vmem %s0, %s290
        %p292 = pneg %p45
        %p293 = pneg %p42
        %p294 = pneg %p66
        %p295 = pneg %p63
        %p296 = pneg %p87
        %p297 = pneg %p84
        %p298 = pneg %p108
        %p299 = pneg %p105
        %p300 = pneg %p129
        %p301 = pneg %p126
        %p302 = pneg %p150
        %p303 = pneg %p147
        %p304 = pneg %p171
        %p305 = pneg %p168
        %p306 = pneg %p197
        %p307 = pneg %p194
        %s308 = sand.u32 %s184, 1
        %s309 = scalar_lea.sflag [#allocation4], %s308
        %s310 = sand.u32 %s184, 1
        %s311 = smul.addr %s310, 8
        %s312 = scalar_lea.vmem [#allocation5], %s311
        %p313 = pneg %p223
        %p314 = pneg %p220
        %p315 = scmp.lt.s32.totalorder %s24, 1
        %s316 = scalar_select %p315, %s24, 1
        %s317 = smul.addr %s316, 8
        %s318 = scalar_lea.vmem %s8, %s317
        %p319 = scmp.lt.s32.totalorder %s24, 1
        %s320 = scalar_select %p319, %s24, 1
        %s321 = smul.addr %s320, 8
        %s322 = scalar_lea.vmem %s0, %s321
        %p323 = scmp.lt.s32.totalorder %s24, 1
        %s324 = scalar_select %p323, %s24, 1
        %s325 = smul.addr %s324, 8
        %s326 = scalar_lea.vmem %s8, %s325
        %v328 = vld [vmem:[%s322] sm:$0xff]
        %v329 = vpack.c.bf16 %v328, %v328
        %v330 = vld [vmem:[#allocation2] sm:$0xf]
        %v331 = vld [vmem:[#allocation2 + $0x4] sm:$0x1]
        %v332 = vld [vmem:[%s2] sm:$0x1]
        %v334 = vlaneseq
        %v335 = vshrl.u32 %v334, 7
        %v336 = vsub.s32 0, %v335
        %v337 = vrot.slane %v332, %v336
        %v341 = vunpack.c.l.b16 %v330
        %v342 = vunpack.c.l.b16 %v331
        %v343 = vpack.c.b16 %v342, %v341
        %vm344 = vcmask 80896
        %v346 = vsel %vm344, %v329, 0
        %vm348 = vcmask 1044480
        %v350 = vsel %vm348, %v343, 0
        %352 = vmatprep.subr.bf16.mxu0 0
        %353 = vmatpush1.bf16.msra.mxu0 %v350
        %354 = vmatprep.subr.bf16.mxu0 0
        %355 = vmatpush1.bf16.msra.mxu0 0
        %356 = vmatprep.subr.bf16.mxu0 0
        %357 = vmatpush1.bf16.msra.mxu0 0
        %358 = vmatprep.subr.bf16.mxu0 0
        %359 = vmatpush1.bf16.msra.mxu0 0
        %360 = vmatprep.subr.bf16.mxu0 0
        %361 = vmatpush1.bf16.msra.mxu0 0
        %362 = vmatprep.subr.bf16.mxu0 0
        %363 = vmatpush1.bf16.msra.mxu0 0
        %364 = vmatprep.subr.bf16.mxu0 0
        %365 = vmatpush1.bf16.msra.mxu0 0
        %366 = vmatprep.subr.bf16.mxu0 0
        %367 = vmatpush1.bf16.msra.mxu0 0
        %368 = vmatprep.subr.bf16.mxu0 0
        %369 = vmatpush1.bf16.msra.mxu0 0
        %370 = vmatprep.subr.bf16.mxu0 0
        %371 = vmatpush1.bf16.msra.mxu0 0
        %372 = vmatprep.subr.bf16.mxu0 0
        %373 = vmatpush1.bf16.msra.mxu0 0
        %374 = vmatprep.subr.bf16.mxu0 0
        %375 = vmatpush1.bf16.msra.mxu0 0
        %376 = vmatprep.subr.bf16.mxu0 0
        %377 = vmatpush1.bf16.msra.mxu0 0
        %378 = vmatprep.subr.bf16.mxu0 0
        %379 = vmatpush1.bf16.msra.mxu0 0
        %380 = vmatprep.subr.bf16.mxu0 0
        %381 = vmatpush1.bf16.msra.mxu0 0
        %382 = vmatprep.subr.bf16.mxu0 0
        %383 = vmatpush1.bf16.msra.mxu0 0
        %384 = vmatprep.mubr.bf16.mxu0 0
        %385 = vmatmul.mubr.bf16.gmra.mrb[0].mxu0 %v346
        %v386 = vpop.f32.mrb[0].mxu0
        %v387 = vadd.f32 %v337, %v386
        %v388 = vpop.f32.mrb[0].mxu0
        %v389 = vpop.f32.mrb[0].mxu0
        %v390 = vpop.f32.mrb[0].mxu0
        %391 = vdwg.mxu0
        %v392 = vmax.f32 %v387, 0.0
        %v393 = vpack.c.bf16 %v392, %v392
        %v394 = vld [vmem:[%s3] sm:$0xf]
        %v395 = vld [vmem:[%s3 + $0x4] sm:$0xf]
        %v396 = vld [vmem:[%s3 + $0x8] sm:$0xf]
        %v397 = vld [vmem:[%s3 + $0xc] sm:$0xf]
        %v398 = vld [vmem:[%s3 + $0x10] sm:$0xf]
        %v399 = vld [vmem:[%s3 + $0x14] sm:$0xf]
        %v400 = vld [vmem:[%s3 + $0x18] sm:$0xf]
        %v401 = vld [vmem:[%s3 + $0x1c] sm:$0xf]
        %v402 = vld [vmem:[%s3 + $0x20] sm:$0xf]
        %v403 = vld [vmem:[%s3 + $0x24] sm:$0xf]
        %v404 = vld [vmem:[%s3 + $0x28] sm:$0xf]
        %v405 = vld [vmem:[%s3 + $0x2c] sm:$0xf]
        %v406 = vld [vmem:[%s4] sm:$0x1]
        %v408 = vlaneseq
        %v409 = vshrl.u32 %v408, 7
        %v410 = vsub.s32 0, %v409
        %v411 = vrot.slane %v406, %v410
        %v425 = vunpack.c.l.b16 %v394
        %v426 = vunpack.c.l.b16 %v395
        %v427 = vunpack.c.l.b16 %v396
        %v428 = vunpack.c.l.b16 %v397
        %v429 = vunpack.c.l.b16 %v398
        %v430 = vunpack.c.l.b16 %v399
        %v431 = vunpack.c.l.b16 %v400
        %v432 = vunpack.c.l.b16 %v401
        %v433 = vunpack.c.l.b16 %v402
        %v434 = vunpack.c.l.b16 %v403
        %v435 = vunpack.c.l.b16 %v404
        %v436 = vunpack.c.l.b16 %v405
        %v437 = vpack.c.b16 %v426, %v425
        %v438 = vpack.c.b16 %v428, %v427
        %v439 = vpack.c.b16 %v430, %v429
        %v440 = vpack.c.b16 %v432, %v431
        %v441 = vpack.c.b16 %v434, %v433
        %v442 = vpack.c.b16 %v436, %v435
        %vm449 = vcmask 785408
        %v451 = vsel %vm449, %v393, 0
        %453 = vmatprep.subr.bf16.mxu0 0
        %454 = vmatpush1.bf16.msra.mxu0 %v437
        %455 = vmatprep.subr.bf16.mxu0 0
        %456 = vmatpush1.bf16.msra.mxu0 %v438
        %457 = vmatprep.subr.bf16.mxu0 0
        %458 = vmatpush1.bf16.msra.mxu0 %v439
        %459 = vmatprep.subr.bf16.mxu0 0
        %460 = vmatpush1.bf16.msra.mxu0 %v440
        %461 = vmatprep.subr.bf16.mxu0 0
        %462 = vmatpush1.bf16.msra.mxu0 %v441
        %463 = vmatprep.subr.bf16.mxu0 0
        %464 = vmatpush1.bf16.msra.mxu0 %v442
        %465 = vmatprep.subr.bf16.mxu0 0
        %466 = vmatpush1.bf16.msra.mxu0 0
        %467 = vmatprep.subr.bf16.mxu0 0
        %468 = vmatpush1.bf16.msra.mxu0 0
        %469 = vmatprep.subr.bf16.mxu0 0
        %470 = vmatpush1.bf16.msra.mxu0 0
        %471 = vmatprep.subr.bf16.mxu0 0
        %472 = vmatpush1.bf16.msra.mxu0 0
        %473 = vmatprep.subr.bf16.mxu0 0
        %474 = vmatpush1.bf16.msra.mxu0 0
        %475 = vmatprep.subr.bf16.mxu0 0
        %476 = vmatpush1.bf16.msra.mxu0 0
        %477 = vmatprep.subr.bf16.mxu0 0
        %478 = vmatpush1.bf16.msra.mxu0 0
        %479 = vmatprep.subr.bf16.mxu0 0
        %480 = vmatpush1.bf16.msra.mxu0 0
        %481 = vmatprep.subr.bf16.mxu0 0
        %482 = vmatpush1.bf16.msra.mxu0 0
        %483 = vmatprep.subr.bf16.mxu0 0
        %484 = vmatpush1.bf16.msra.mxu0 0
        %485 = vmatprep.mubr.bf16.mxu0 0
        %486 = vmatmul.mubr.bf16.gmra.mrb[0].mxu0 %v451
        %v487 = vpop.f32.mrb[0].mxu0
        %v488 = vadd.f32 %v411, %v487
        %v489 = vpop.f32.mrb[0].mxu0
        %v490 = vpop.f32.mrb[0].mxu0
        %v491 = vpop.f32.mrb[0].mxu0
        %492 = vdwg.mxu0
        %v493 = vmax.f32 %v488, 0.0
        %v494 = vpack.c.bf16 %v493, %v493
        %v495 = vld [vmem:[%s5] sm:$0xf]
        %v496 = vld [vmem:[%s5 + $0x4] sm:$0xf]
        %v497 = vld [vmem:[%s5 + $0x8] sm:$0xf]
        %v498 = vld [vmem:[%s5 + $0xc] sm:$0xf]
        %v499 = vld [vmem:[%s5 + $0x10] sm:$0xf]
        %v500 = vld [vmem:[%s5 + $0x14] sm:$0xf]
        %v501 = vld [vmem:[%s5 + $0x18] sm:$0xf]
        %v502 = vld [vmem:[%s5 + $0x1c] sm:$0xf]
        %v503 = vld [vmem:[%s5 + $0x20] sm:$0xf]
        %v504 = vld [vmem:[%s5 + $0x24] sm:$0xf]
        %v505 = vld [vmem:[%s5 + $0x28] sm:$0xf]
        %v506 = vld [vmem:[%s5 + $0x2c] sm:$0xf]
        %v507 = vld [vmem:[%s6] sm:$0x1]
        %v509 = vlaneseq
        %v510 = vshrl.u32 %v509, 7
        %v511 = vsub.s32 0, %v510
        %v512 = vrot.slane %v507, %v511
        %v526 = vunpack.c.l.b16 %v495
        %v527 = vunpack.c.l.b16 %v496
        %v528 = vunpack.c.l.b16 %v497
        %v529 = vunpack.c.l.b16 %v498
        %v530 = vunpack.c.l.b16 %v499
        %v531 = vunpack.c.l.b16 %v500
        %v532 = vunpack.c.l.b16 %v501
        %v533 = vunpack.c.l.b16 %v502
        %v534 = vunpack.c.l.b16 %v503
        %v535 = vunpack.c.l.b16 %v504
        %v536 = vunpack.c.l.b16 %v505
        %v537 = vunpack.c.l.b16 %v506
        %v538 = vpack.c.b16 %v527, %v526
        %v539 = vpack.c.b16 %v529, %v528
        %v540 = vpack.c.b16 %v531, %v530
        %v541 = vpack.c.b16 %v533, %v532
        %v542 = vpack.c.b16 %v535, %v534
        %v543 = vpack.c.b16 %v537, %v536
        %v551 = vsel %vm449, %v494, 0
        %553 = vmatprep.subr.bf16.mxu0 0
        %554 = vmatpush1.bf16.msra.mxu0 %v538
        %555 = vmatprep.subr.bf16.mxu0 0
        %556 = vmatpush1.bf16.msra.mxu0 %v539
        %557 = vmatprep.subr.bf16.mxu0 0
        %558 = vmatpush1.bf16.msra.mxu0 %v540
        %559 = vmatprep.subr.bf16.mxu0 0
        %560 = vmatpush1.bf16.msra.mxu0 %v541
        %561 = vmatprep.subr.bf16.mxu0 0
        %562 = vmatpush1.bf16.msra.mxu0 %v542
        %563 = vmatprep.subr.bf16.mxu0 0
        %564 = vmatpush1.bf16.msra.mxu0 %v543
        %565 = vmatprep.subr.bf16.mxu0 0
        %566 = vmatpush1.bf16.msra.mxu0 0
        %567 = vmatprep.subr.bf16.mxu0 0
        %568 = vmatpush1.bf16.msra.mxu0 0
        %569 = vmatprep.subr.bf16.mxu0 0
        %570 = vmatpush1.bf16.msra.mxu0 0
        %571 = vmatprep.subr.bf16.mxu0 0
        %572 = vmatpush1.bf16.msra.mxu0 0
        %573 = vmatprep.subr.bf16.mxu0 0
        %574 = vmatpush1.bf16.msra.mxu0 0
        %575 = vmatprep.subr.bf16.mxu0 0
        %576 = vmatpush1.bf16.msra.mxu0 0
        %577 = vmatprep.subr.bf16.mxu0 0
        %578 = vmatpush1.bf16.msra.mxu0 0
        %579 = vmatprep.subr.bf16.mxu0 0
        %580 = vmatpush1.bf16.msra.mxu0 0
        %581 = vmatprep.subr.bf16.mxu0 0
        %582 = vmatpush1.bf16.msra.mxu0 0
        %583 = vmatprep.subr.bf16.mxu0 0
        %584 = vmatpush1.bf16.msra.mxu0 0
        %585 = vmatprep.mubr.bf16.mxu0 0
        %586 = vmatmul.mubr.bf16.gmra.mrb[0].mxu0 %v551
        %v587 = vpop.f32.mrb[0].mxu0
        %v588 = vadd.f32 %v512, %v587
        %v589 = vpop.f32.mrb[0].mxu0
        %v590 = vpop.f32.mrb[0].mxu0
        %v591 = vpop.f32.mrb[0].mxu0
        %592 = vdwg.mxu0
        %593 = vst.msk [vmem:[%s312] sm:$0xff] %vm344, %v588
        %v594 = vmax.f32 %v588, 0.0
        %596 = vrot.lane.b32.xlu0 %v594, 118
        %v597 = vpop.permute.xlu0 %596
        %vm599 = vcmask 7168
        %600 = vst.msk [vmem:[%s326] sm:$0xff] %vm599, %v597
        %s601 = sand.u32 %s184, 1
        %s602 = scalar_lea.sflag [#allocation4], %s601
        %s603 = sand.u32 %s184, 1
        %s604 = smul.addr %s603, 8
        %s605 = scalar_lea.vmem [#allocation5], %s604
        %p606 = scmp.lt.s32.totalorder %s24, 1
        %s607 = scalar_select %p606, %s24, 1
        %s608 = smul.addr %s607, 8
        %s609 = scalar_lea.vmem %s8, %s608
        // Predicated region
        $region53: #{tpu_custom_call.1} parent=47 // pred_check
          %p610 = pneg %p194
        $region54: #{tpu_custom_call.1} parent=47 // pred_check_branch
          %612 = sbr.rel (%p610) target = $region56
        $region55: #{tpu_custom_call.1} parent=47 // pred_region
          %s614 = ssub.s32 128, 128
          %615 = vsyncadd %s602, %s614
          %s616 = smul.addr %s24, 128
          %s617 = scalar_lea.hbm %s7, %s616
          %s619 = sshll.u32 %s605, 4
          %s620 = int_to_ptr.vmem [resolvable:$true] %s619
          %622 = dma.vmem_to_hbm [thread:$0]  %s620, 128, %s617, %s602
        $region56: #{tpu_custom_call.1} parent=47 // pred_fallthru
          _
        // Predicated region
        $region57: #{tpu_custom_call.1} parent=47 // pred_check
          %p623 = pneg %p220
        $region58: #{tpu_custom_call.1} parent=47 // pred_check_branch
          %625 = sbr.rel (%p623) target = $region60
        $region59: #{tpu_custom_call.1} parent=47 // pred_region
          _
        $region60: #{tpu_custom_call.1} parent=47 // pred_fallthru
          _
      $region48: #{tpu_custom_call.1} parent=5 // pred_fallthru
        _
      %p626 = scmp.le.s32.totalorder 2, %s19
      // Predicated region
      $region61: #{tpu_custom_call.1} parent=5 // pred_check
        %p627 = pneg %p626
      $region62: #{tpu_custom_call.1} parent=5 // pred_check_branch
        %629 = sbr.rel (%p627) target = $region64
      $region63: #{tpu_custom_call.1} parent=5 // pred_region
        %s630 = ssub.s32 %s19, 2
        // Predicated region
        $region65: #{tpu_custom_call.1} parent=63 // pred_check
          %p631 = pneg %p200
        $region66: #{tpu_custom_call.1} parent=63 // pred_check_branch
          %633 = sbr.rel (%p631) target = $region68
        $region67: #{tpu_custom_call.1} parent=63 // pred_region
          %s634 = sand.u32 %s185, 1
          %s635 = scalar_lea.sflag [#allocation4], %s634
          %s636 = sand.u32 %s185, 1
          %s637 = smul.addr %s636, 8
          %s638 = scalar_lea.vmem [#allocation5], %s637
          %639 = dma.done %s635, 128
        $region68: #{tpu_custom_call.1} parent=63 // pred_fallthru
          _
        // Predicated region
        $region69: #{tpu_custom_call.1} parent=63 // pred_check
          %p640 = pneg %p226
        $region70: #{tpu_custom_call.1} parent=63 // pred_check_branch
          %642 = sbr.rel (%p640) target = $region72
        $region71: #{tpu_custom_call.1} parent=63 // pred_region
          %p643 = scmp.lt.s32.totalorder %s25, 1
          %s644 = scalar_select %p643, %s25, 1
          %s645 = smul.addr %s644, 8
          %s646 = scalar_lea.vmem %s8, %s645
        $region72: #{tpu_custom_call.1} parent=63 // pred_fallthru
          _
      $region64: #{tpu_custom_call.1} parent=5 // pred_fallthru
        _
    $region6: #{tpu_custom_call.1} parent=1 // loop_footer
      %s23 = sadd.s32 1, %s19
    $region7: #{tpu_custom_call.1} parent=1 // loop_footer_branch
      %18 = sbr.rel target = $region3
    $region8: #{tpu_custom_call.1} parent=1 // loop_exit
      _
    %647 = vsyncpa [#allocation3], 1
    %s648 = scalar_lea.sflag [#allocation3], 1
    %649 = vsyncpa %s648, 1
    %650 = vsyncpa [#allocation4], 1
    %s651 = scalar_lea.sflag [#allocation4], 1
    %652 = vsyncpa %s651, 1

</llo_original>
